<compile_context>
chip_gen: v7x
topology: tpu7x:2x2x1
jax: 0.10.0
libtpu: 0.0.40
codegen_flags: <defaults>
</compile_context>

<pallas_src>
import jax
import jax.numpy as jnp
from jax.experimental import pallas as pl
from jax.experimental.pallas import tpu as pltpu


def _round_up(x, m):
    return ((x + m - 1) // m) * m


# ---------------------------------------------------------------------------
# Kernels
# ---------------------------------------------------------------------------

def _fused_kernel(h_ref, wo_ref, bo_ref, o_ref):
    """One output tile with the full K dimension: o = h @ wo + bo."""
    acc = jnp.dot(h_ref[...], wo_ref[...], preferred_element_type=jnp.float32)
    o_ref[...] = (acc + bo_ref[...].astype(jnp.float32)).astype(o_ref.dtype)


def _ktiled_kernel_f32out(h_ref, wo_ref, bo_ref, o_ref):
    """K-tiled path, f32 output: accumulate directly into o_ref (no scratch)."""
    k = pl.program_id(2)

    @pl.when(k == 0)
    def _init():
        o_ref[...] = jnp.zeros_like(o_ref)

    o_ref[...] += jnp.dot(h_ref[...], wo_ref[...],
                          preferred_element_type=jnp.float32)

    @pl.when(k == pl.num_programs(2) - 1)
    def _finalize():
        o_ref[...] += bo_ref[...].astype(jnp.float32)


def _ktiled_kernel_acc(h_ref, wo_ref, bo_ref, o_ref, acc_ref):
    """K-tiled path, non-f32 output: f32 VMEM accumulator + cast epilogue."""
    k = pl.program_id(2)

    @pl.when(k == 0)
    def _init():
        acc_ref[...] = jnp.zeros_like(acc_ref)

    acc_ref[...] += jnp.dot(h_ref[...], wo_ref[...],
                            preferred_element_type=jnp.float32)

    @pl.when(k == pl.num_programs(2) - 1)
    def _finalize():
        o_ref[...] = (acc_ref[...] + bo_ref[...].astype(jnp.float32)
                      ).astype(o_ref.dtype)


# ---------------------------------------------------------------------------
# Wrapper
# ---------------------------------------------------------------------------

def mlp_predictor(h, wo, bo, *, tm=256, tn=512, tk=512,
                  compute_dtype=None,
                  vmem_budget_bytes=24 * 1024 * 1024,
                  vmem_limit_bytes=48 * 1024 * 1024):
    """o = h @ wo + bo.  h:[B,K], wo:[K,J], bo:[J] -> o:[B,J]."""
    B, K = h.shape
    Kw, J = wo.shape
    assert K == Kw and bo.shape == (J,)

    out_dtype = h.dtype
    # Optional reduced-precision MXU inputs (big win on v6e/v7x: bf16 MXU rate
    # and half the HBM/VMEM bytes).  Accumulation + bias epilogue stay f32.
    if compute_dtype is not None:
        h = h.astype(compute_dtype)
        wo = wo.astype(compute_dtype)
    isz = jnp.dtype(h.dtype).itemsize
    osz = jnp.dtype(out_dtype).itemsize

    bo2 = bo.reshape(1, J)  # 2-D bias row for a clean (sublane, lane) layout

    # ---- Path 0: tiny single-block fast path (no grid, no padding) ----------
    if (B * K + K * J + B * J + J) * max(isz, osz) <= (2 << 20):
        return pl.pallas_call(
            _fused_kernel,
            out_shape=jax.ShapeDtypeStruct((B, J), out_dtype),
        )(h, wo, bo2)

    tm = max(8, min(tm, _round_up(B, 8)))
    grid_m = pl.cdiv(B, tm)
    flops = 2.0 * B * K * J

    # ---- Path 1: weight-stationary — wo fully VMEM-resident, grid over M ----
    resident_bytes = (2 * tm * K * isz      # h tile (double-buffered)
                      + 2 * K * J * isz     # wo (constant block)
                      + 2 * tm * J * osz    # output tile
                      + 2 * J * isz)        # bias row
    if resident_bytes <= vmem_budget_bytes:
        return pl.pallas_call(
            _fused_kernel,
            out_shape=jax.ShapeDtypeStruct((B, J), out_dtype),
            grid=(grid_m,),
            in_specs=[
                pl.BlockSpec((tm, K), lambda i: (i, 0)),
                pl.BlockSpec((K, J), lambda i: (0, 0)),   # constant -> DMA'd once
                pl.BlockSpec((1, J), lambda i: (0, 0)),
            ],
            out_specs=pl.BlockSpec((tm, J), lambda i: (i, 0)),
            compiler_params=pltpu.CompilerParams(
                dimension_semantics=("parallel",),
                vmem_limit_bytes=vmem_limit_bytes),
            cost_estimate=pl.CostEstimate(
                flops=int(flops), transcendentals=0,
                bytes_accessed=int((B * K + K * J + J) * isz + B * J * osz)),
        )(h, wo, bo2)

    # ---- Path 2: 2-D grid (J panels outer, M tiles inner); full K, no acc ---
    tn = min(tn, _round_up(J, 128))
    grid_n = pl.cdiv(J, tn)
    panel_bytes = (2 * tm * K * isz + 2 * K * tn * isz
                   + 2 * tm * tn * osz + 2 * tn * isz)
    if panel_bytes <= vmem_budget_bytes:
        return pl.pallas_call(
            _fused_kernel,
            out_shape=jax.ShapeDtypeStruct((B, J), out_dtype),
            # j outer / i inner: each wo panel is fetched once from HBM and
            # stays resident while all M tiles stream past it.
            grid=(grid_n, grid_m),
            in_specs=[
                pl.BlockSpec((tm, K), lambda j, i: (i, 0)),
                pl.BlockSpec((K, tn), lambda j, i: (0, j)),
                pl.BlockSpec((1, tn), lambda j, i: (0, j)),
            ],
            out_specs=pl.BlockSpec((tm, tn), lambda j, i: (i, j)),
            compiler_params=pltpu.CompilerParams(
                dimension_semantics=("parallel", "parallel"),
                vmem_limit_bytes=vmem_limit_bytes),
            cost_estimate=pl.CostEstimate(
                flops=int(flops), transcendentals=0,
                bytes_accessed=int((grid_n * B * K + K * J + grid_n * J) * isz
                                   + B * J * osz)),
        )(h, wo, bo2)

    # ---- Path 3: very large K — 3-D grid with K-axis accumulation -----------
    tk = min(tk, _round_up(K, 128))
    Kp = _round_up(K, tk)
    if Kp != K:
        # The only padding required for correctness: the K tail must be zero so
        # out-of-range reduction reads contribute nothing to the accumulator.
        h = jnp.pad(h, ((0, 0), (0, Kp - K)))
        wo = jnp.pad(wo, ((0, Kp - K), (0, 0)))
    grid_k = Kp // tk

    common = dict(
        out_shape=jax.ShapeDtypeStruct((B, J), out_dtype),
        grid=(grid_m, grid_n, grid_k),
        in_specs=[
            pl.BlockSpec((tm, tk), lambda i, j, k: (i, k)),
            pl.BlockSpec((tk, tn), lambda i, j, k: (k, j)),
            pl.BlockSpec((1, tn), lambda i, j, k: (0, j)),  # resident across k
        ],
        out_specs=pl.BlockSpec((tm, tn), lambda i, j, k: (i, j)),
        compiler_params=pltpu.CompilerParams(
            dimension_semantics=("parallel", "parallel", "arbitrary"),
            vmem_limit_bytes=vmem_limit_bytes),
        cost_estimate=pl.CostEstimate(
            flops=int(2.0 * B * Kp * J), transcendentals=0,
            bytes_accessed=int((grid_n * B * Kp + grid_m * Kp * J) * isz
                               + B * J * osz)),
    )
    if jnp.dtype(out_dtype) == jnp.float32:
        # Output block is resident across K -> accumulate straight into o_ref.
        return pl.pallas_call(_ktiled_kernel_f32out, **common)(h, wo, bo2)
    return pl.pallas_call(
        _ktiled_kernel_acc,
        scratch_shapes=[pltpu.VMEM((tm, tn), jnp.float32)],
        **common,
    )(h, wo, bo2)


def xavier_uniform(key, shape, dtype=jnp.float32):
    # matches torch.nn.init.xavier_uniform_ for a 2-D weight [fan_in, fan_out]
    fan_in, fan_out = shape
    limit = (6.0 / (fan_in + fan_out)) ** 0.5
    return jax.random.uniform(key, shape, dtype, minval=-limit, maxval=limit)


if __name__ == "__main__":
    # --- Primary check: the module's natural small shape (tiny fast path) ---
    batch = 8
    hidden_size = 32
    class_num = 16

    key = jax.random.PRNGKey(0)
    k_h, k_w = jax.random.split(key)

    h = jax.random.normal(k_h, (batch, hidden_size), dtype=jnp.float32)
    wo = xavier_uniform(k_w, (hidden_size, class_num))
    bo = jnp.zeros((class_num,), dtype=jnp.float32)  # torch.zeros init

    out = mlp_predictor(h, wo, bo)
    jax.block_until_ready(out)

    ref = jnp.einsum("bk,kj->bj", h, wo) + bo
    assert out.shape == (batch, class_num)
    assert jnp.allclose(out, ref, atol=1e-5, rtol=1e-5)

    # --- Sanity: weight-stationary tiled path (grid over M, wo DMA'd once) ---
    k2, k3 = jax.random.split(jax.random.PRNGKey(1))
    h2 = jax.random.normal(k2, (512, 1024), dtype=jnp.float32)
    wo2 = xavier_uniform(k3, (1024, 384))
    bo2 = 0.1 * jax.random.normal(jax.random.PRNGKey(2), (384,), jnp.float32)
    out2 = mlp_predictor(h2, wo2, bo2)
    jax.block_until_ready(out2)
    ref2 = jnp.dot(h2, wo2, precision=jax.lax.Precision.HIGHEST) + bo2
    assert jnp.allclose(out2, ref2, atol=2e-3, rtol=2e-3)

    # --- Sanity: K-tiled fallback with a ragged K tail (zero-pad only on K) ---
    k4, k5 = jax.random.split(jax.random.PRNGKey(3))
    h3 = jax.random.normal(k4, (256, 1000), dtype=jnp.float32)
    wo3 = xavier_uniform(k5, (1000, 384))
    bo3 = 0.1 * jax.random.normal(jax.random.PRNGKey(4), (384,), jnp.float32)
    out3 = mlp_predictor(h3, wo3, bo3, tk=256, vmem_budget_bytes=1 << 20)
    jax.block_until_ready(out3)
    ref3 = jnp.dot(h3, wo3, precision=jax.lax.Precision.HIGHEST) + bo3
    assert jnp.allclose(out3, ref3, atol=2e-3, rtol=2e-3)

    print("KERNEL_OK")
</pallas_src>

<mosaic_0001>
module attributes {stable_mosaic.version = 11 : i64} {
  func.func @_fused_kernel(%arg0: memref<8x32xf32, #tpu.memory_space<vmem>>, %arg1: memref<32x16xf32, #tpu.memory_space<vmem>>, %arg2: memref<1x16xf32, #tpu.memory_space<vmem>>, %arg3: memref<8x16xf32, #tpu.memory_space<vmem>>) attributes {dimension_semantics = [], scalar_prefetch = 0 : i64, scratch_operands = 0 : i64, tpu.core_type = #tpu.core_type<tc>} {
    %c0 = arith.constant 0 : index
    %c0_0 = arith.constant 0 : index
    %0 = vector.load %arg0[%c0, %c0_0] : memref<8x32xf32, #tpu.memory_space<vmem>>, vector<8x32xf32>
    %c0_1 = arith.constant 0 : index
    %c0_2 = arith.constant 0 : index
    %1 = vector.load %arg1[%c0_1, %c0_2] : memref<32x16xf32, #tpu.memory_space<vmem>>, vector<32x16xf32>
    %cst = arith.constant dense<0.000000e+00> : vector<8x16xf32>
    %2 = tpu.matmul %0, %1, %cst {dimension_numbers = #tpu.dot_dimension_numbers<[1], [0], [0], [1], [0, 0, 1, 1], [], []>} : vector<8x32xf32>, vector<32x16xf32>, vector<8x16xf32> -> vector<8x16xf32>
    %c0_3 = arith.constant 0 : index
    %c0_4 = arith.constant 0 : index
    %3 = vector.load %arg2[%c0_3, %c0_4] : memref<1x16xf32, #tpu.memory_space<vmem>>, vector<1x16xf32>
    %4 = vector.broadcast %3 : vector<1x16xf32> to vector<8x16xf32>
    %5 = arith.addf %2, %4 : vector<8x16xf32>
    %c0_5 = arith.constant 0 : index
    %c0_6 = arith.constant 0 : index
    %6 = vector.load %arg3[%c0_5, %c0_6] : memref<8x16xf32, #tpu.memory_space<vmem>>, vector<8x16xf32>
    tpu.vector_store %arg3[%c0_5, %c0_6], %5 {strides = array<i32>} : memref<8x16xf32, #tpu.memory_space<vmem>>, vector<8x16xf32>,
    return
  }
}

</mosaic_0001>

<llo_original>
// kernel: tpu_custom_call.1
$region0: #{tpu_custom_call.1}
  #allocation0 [shape = 'u32[]', space=smem, size = 0x4, offset = 0x4, fixed_abs, tag = 'smem constant byte address 0x4 - core index']
  #allocation1 [shape = 'u32[144,128]{1,0:T(1,128)}', space=vmem, size = 0x12000, scoped, tag = 'internal scratch']
  %s0 = inlined_call_operand.vmem [shape: f32[8,32], index: 0, kind: input, shape index: {}]
  %s1 = inlined_call_operand.vmem [shape: f32[32,16], index: 1, kind: input, shape index: {}]
  %s2 = inlined_call_operand.vmem [shape: f32[1,16], index: 2, kind: input, shape index: {}]
  %s3 = inlined_call_operand.hbm [shape: f32[8,16], index: 3, kind: output, shape index: {}]
  %s4 = sld [smem:[#allocation0]]
  $region22: #{tpu_custom_call.1} parent=0
    _
  %s6 = ssub.s32 1, %s4
  %s7 = scalar_select 0, %s6, %s4
  $region1: #{tpu_custom_call.1} parent=0
    #allocation2 [shape = 'u8[4096]{0}', space=vmem, size = 0x1000, scoped, tag = 'output window, operand 0, single buffered']
    #allocation3 [shape = 's32[1]{0}', space=sflag, size = 0x4, scoped, tag = 'scoped memory for tpu_custom_call.1']
    %8 = vsyncpa [#allocation3], 0
    // Predicated region
    $region2: #{tpu_custom_call.1} parent=1 // pred_check
      _
    $region3: #{tpu_custom_call.1} parent=1 // pred_check_branch
      %10 = sbr.rel (0) target = $region5
    $region4: #{tpu_custom_call.1} parent=1 // pred_region
      _
    $region5: #{tpu_custom_call.1} parent=1 // pred_fallthru
      _
    // Predicated region
    $region6: #{tpu_custom_call.1} parent=1 // pred_check
      _
    $region7: #{tpu_custom_call.1} parent=1 // pred_check_branch
      %12 = sbr.rel (0) target = $region9
    $region8: #{tpu_custom_call.1} parent=1 // pred_region
      _
    $region9: #{tpu_custom_call.1} parent=1 // pred_fallthru
      _
    // Predicated region
    $region10: #{tpu_custom_call.1} parent=1 // pred_check
      _
    $region11: #{tpu_custom_call.1} parent=1 // pred_check_branch
      %14 = sbr.rel (0) target = $region13
    $region12: #{tpu_custom_call.1} parent=1 // pred_region
      _
    $region13: #{tpu_custom_call.1} parent=1 // pred_fallthru
      _
    %v15 = vld [vmem:[%s0] sm:$0xff]
    %v16 = vld [vmem:[%s1] sm:$0xff]
    %v17 = vld [vmem:[%s1 + $0x8] sm:$0xff]
    %v18 = vld [vmem:[%s1 + $0x10] sm:$0xff]
    %v19 = vld [vmem:[%s1 + $0x18] sm:$0xff]
    %v20 = vld [vmem:[%s2] sm:$0x1]
    %v22 = vlaneseq
    %v23 = vshrl.u32 %v22, 7
    %v24 = vsub.s32 0, %v23
    %v25 = vrot.slane %v20, %v24
    %vm27 = vcmask 261120
    %v29 = vsel %vm27, %v15, 0
    %31 = vmatprep.subr.mxu0 0.0
    %32 = vmatpush1.msra.mxu0 %v16
    %33 = vmatprep.subr.mxu0 0.0
    %34 = vmatpush1.msra.mxu0 %v17
    %35 = vmatprep.subr.mxu0 0.0
    %36 = vmatpush1.msra.mxu0 %v18
    %37 = vmatprep.subr.mxu0 0.0
    %38 = vmatpush1.msra.mxu0 %v19
    %39 = vmatprep.subr.mxu0 0.0
    %40 = vmatpush1.msra.mxu0 0.0
    %41 = vmatprep.subr.mxu0 0.0
    %42 = vmatpush1.msra.mxu0 0.0
    %43 = vmatprep.subr.mxu0 0.0
    %44 = vmatpush1.msra.mxu0 0.0
    %45 = vmatprep.subr.mxu0 0.0
    %46 = vmatpush1.msra.mxu0 0.0
    %47 = vmatprep.subr.mxu0 0.0
    %48 = vmatpush1.msra.mxu0 0.0
    %49 = vmatprep.subr.mxu0 0.0
    %50 = vmatpush1.msra.mxu0 0.0
    %51 = vmatprep.subr.mxu0 0.0
    %52 = vmatpush1.msra.mxu0 0.0
    %53 = vmatprep.subr.mxu0 0.0
    %54 = vmatpush1.msra.mxu0 0.0
    %55 = vmatprep.subr.mxu0 0.0
    %56 = vmatpush1.msra.mxu0 0.0
    %57 = vmatprep.subr.mxu0 0.0
    %58 = vmatpush1.msra.mxu0 0.0
    %59 = vmatprep.subr.mxu0 0.0
    %60 = vmatpush1.msra.mxu0 0.0
    %61 = vmatprep.subr.mxu0 0.0
    %62 = vmatpush1.msra.mxu0 0.0
    %63 = vmatprep.subr.mxu0 0.0
    %64 = vmatpush1.msra.mxu0 0.0
    %65 = vmatprep.subr.mxu0 0.0
    %66 = vmatpush1.msra.mxu0 0.0
    %67 = vmatprep.subr.mxu0 0.0
    %68 = vmatpush1.msra.mxu0 0.0
    %69 = vmatprep.subr.mxu0 0.0
    %70 = vmatpush1.msra.mxu0 0.0
    %71 = vmatprep.subr.mxu0 0.0
    %72 = vmatpush1.msra.mxu0 0.0
    %73 = vmatprep.subr.mxu0 0.0
    %74 = vmatpush1.msra.mxu0 0.0
    %75 = vmatprep.subr.mxu0 0.0
    %76 = vmatpush1.msra.mxu0 0.0
    %77 = vmatprep.subr.mxu0 0.0
    %78 = vmatpush1.msra.mxu0 0.0
    %79 = vmatprep.subr.mxu0 0.0
    %80 = vmatpush1.msra.mxu0 0.0
    %81 = vmatprep.subr.mxu0 0.0
    %82 = vmatpush1.msra.mxu0 0.0
    %83 = vmatprep.subr.mxu0 0.0
    %84 = vmatpush1.msra.mxu0 0.0
    %85 = vmatprep.subr.mxu0 0.0
    %86 = vmatpush1.msra.mxu0 0.0
    %87 = vmatprep.subr.mxu0 0.0
    %88 = vmatpush1.msra.mxu0 0.0
    %89 = vmatprep.subr.mxu0 0.0
    %90 = vmatpush1.msra.mxu0 0.0
    %91 = vmatprep.subr.mxu0 0.0
    %92 = vmatpush1.msra.mxu0 0.0
    %93 = vmatprep.subr.mxu0 0.0
    %94 = vmatpush1.msra.mxu0 0.0
    %95 = vmatprep.mubr.f32.mxu0 0.0
    %96 = vmatmul.mubr.f32.gmra.mrb[0].mxu0 %v29
    %v97 = vpop.f32.mrb[0].mxu0
    %v98 = vadd.f32 %v25, %v97
    %v99 = vpop.f32.mrb[0].mxu0
    %100 = vdwg.mxu0
    %vm101 = vcmask 130048
    %102 = vst.msk [vmem:[#allocation2] sm:$0xff] %vm101, %v98
    // Predicated region
    $region14: #{tpu_custom_call.1} parent=1 // pred_check
      _
    $region15: #{tpu_custom_call.1} parent=1 // pred_check_branch
      %104 = sbr.rel (0) target = $region17
    $region16: #{tpu_custom_call.1} parent=1 // pred_region
      %s106 = ssub.s32 128, 128
      %107 = vsyncadd [#allocation3], %s106
      %s109 = sshll.u32 [#allocation2], 4
      %s110 = int_to_ptr.vmem [resolvable:$true] %s109
      %112 = dma.vmem_to_hbm [thread:$0]  %s110, 128, %s3, [#allocation3]
    $region17: #{tpu_custom_call.1} parent=1 // pred_fallthru
      _
    // Predicated region
    $region18: #{tpu_custom_call.1} parent=1 // pred_check
      _
    $region19: #{tpu_custom_call.1} parent=1 // pred_check_branch
      %114 = sbr.rel (0) target = $region21
    $region20: #{tpu_custom_call.1} parent=1 // pred_region
      %115 = dma.done [#allocation3], 128
    $region21: #{tpu_custom_call.1} parent=1 // pred_fallthru
      _
    %116 = vsyncpa [#allocation3], 1

</llo_original>
